<compile_context>
chip_gen: v6e
topology: v6e:2x2x1
jax: 0.10.0
libtpu: 0.0.40
codegen_flags: <defaults>
</compile_context>

<pallas_src>
import functools

import jax
import jax.numpy as jnp
import numpy as np
from jax.experimental import pallas as pl
from jax.experimental.pallas import tpu as pltpu


# ----------------------------- Fused Pallas kernel ------------------------- #

def fused_dqn_kernel(pt_ref, w_ref, gb_ref, wfc_ref, bfc_ref, o_ref,
                     *, n_batch, c_out, k_dim):
    # pt_ref : (N, K, P)        im2col patches (feature order (c_in, kh, kw))
    # w_ref  : (C_out, K)       conv weight reshaped (conv bias omitted: it
    #                           cancels exactly through training-mode BN)
    # gb_ref : (2, C_out, 1)    [gamma; beta]
    # wfc_ref: (O, C_out, P)    FC weight, lane-dense (PyTorch flatten = (c, p))
    # bfc_ref: (1, O)           FC bias
    # o_ref  : (N, O)           Q-values

    # --- Conv: one batched, lane-dense MXU contraction --------------------- #
    w_b = jnp.broadcast_to(w_ref[...][None], (n_batch, c_out, k_dim))
    conv = jax.lax.dot_general(
        w_b, pt_ref[...],
        dimension_numbers=(((2,), (1,)), ((0,), (0,))),
        preferred_element_type=jnp.float32)                   # (N, C_out, P)

    # --- BatchNorm2d (batch statistics, biased var) + ReLU ------------------ #
    inv_count = 1.0 / (conv.shape[0] * conv.shape[2])
    mean = jnp.sum(jnp.sum(conv, axis=2, keepdims=True),      # lane reduce
                   axis=0, keepdims=True) * inv_count         # (1, C_out, 1)
    cen = conv - mean
    var = jnp.sum(jnp.sum(cen * cen, axis=2, keepdims=True),
                  axis=0, keepdims=True) * inv_count          # (1, C_out, 1)
    gamma = gb_ref[0]                                         # (C_out, 1)
    beta = gb_ref[1]                                          # (C_out, 1)
    scale = gamma * jax.lax.rsqrt(var[0] + 1e-5)              # (C_out, 1)
    shift = beta - mean[0] * scale
    h = jnp.maximum(conv * scale + shift, 0.0)                # (N, C_out, P)

    # --- FC: broadcasted multiply + reduces over (c, p), bias added once ---- #
    prod = h[:, None, :, :] * wfc_ref[...][None, :, :, :]     # (N, O, C_out, P)
    q = jnp.sum(jnp.sum(prod, axis=3), axis=2)                # (N, O)
    o_ref[...] = q + bfc_ref[...]


# ------------------------------ Host-side glue ----------------------------- #

@functools.partial(jax.jit, static_argnames=("num_outputs",))
def dqn_forward(x, params, num_outputs):
    w_conv, b_conv, gamma, beta, w_fc, b_fc = params
    del b_conv  # exactly cancels through training-mode BN (see header note)

    N, C_in, H, W = x.shape
    C_out, _, KH, KW = w_conv.shape
    Ho, Wo = H - KH + 1, W - KW + 1
    K = C_in * KH * KW
    P = Ho * Wo

    # im2col as one XLA op; output feature order is (c_in, kh, kw), matching
    # w_conv.reshape(C_out, K).  Only a trailing-dim-merge reshape follows --
    # no host-side transpose / extra HBM round trip.
    patches = jax.lax.conv_general_dilated_patches(
        x, (KH, KW), (1, 1), "VALID",
        dimension_numbers=("NCHW", "OIHW", "NCHW")).reshape(N, K, P)

    w_col = w_conv.reshape(C_out, K)
    gb = jnp.stack([gamma, beta], axis=0).reshape(2, C_out, 1)
    # Lane-dense FC weight: long (P) axis last.  wfc_t[o, c, p] = w_fc[c*P+p, o]
    wfc_t = w_fc.reshape(C_out, P, num_outputs).transpose(2, 0, 1)

    kernel = functools.partial(fused_dqn_kernel,
                               n_batch=N, c_out=C_out, k_dim=K)

    return pl.pallas_call(
        kernel,
        out_shape=jax.ShapeDtypeStruct((N, num_outputs), jnp.float32),
        grid=(1,),
        in_specs=[
            pl.BlockSpec((N, K, P), lambda i: (0, 0, 0)),
            pl.BlockSpec((C_out, K), lambda i: (0, 0)),
            pl.BlockSpec((2, C_out, 1), lambda i: (0, 0, 0)),
            pl.BlockSpec((num_outputs, C_out, P), lambda i: (0, 0, 0)),
            pl.BlockSpec((1, num_outputs), lambda i: (0, 0)),
        ],
        out_specs=pl.BlockSpec((N, num_outputs), lambda i: (0, 0)),
        compiler_params=pltpu.CompilerParams(
            dimension_semantics=("arbitrary",)),
    )(patches, w_col, gb, wfc_t, b_fc.reshape(1, num_outputs))


def reference_forward(x, params):
    """Pure-JAX reference matching PyTorch semantics (training-mode BN).

    Keeps the conv bias, so the allclose check below also verifies that
    dropping it inside the fused kernel is numerically exact."""
    w_conv, b_conv, gamma, beta, w_fc, b_fc = params
    conv = jax.lax.conv_general_dilated(
        x, w_conv, window_strides=(1, 1), padding="VALID",
        dimension_numbers=("NCHW", "OIHW", "NCHW"),
    ) + b_conv[None, :, None, None]
    mean = conv.mean(axis=(0, 2, 3), keepdims=True)
    var = ((conv - mean) ** 2).mean(axis=(0, 2, 3), keepdims=True)
    y = (conv - mean) / jnp.sqrt(var + 1e-5)
    y = y * gamma[None, :, None, None] + beta[None, :, None, None]
    flat = y.reshape(x.shape[0], -1)
    return jnp.maximum(flat, 0.0) @ w_fc + b_fc[None, :]


# --------------------------------- Main ------------------------------------ #

if __name__ == "__main__":
    # Small shapes consistent with the module: input_shape=(4, 16, 16), 4 actions.
    N, C_in, H, W = 2, 4, 16, 16
    C_out, KH, KW = 8, 3, 3
    num_outputs = 4
    Ho, Wo = H - KH + 1, W - KW + 1
    conv_flat = C_out * Ho * Wo  # 8 * 14 * 14 = 1568

    key = jax.random.PRNGKey(0)
    k_x, k_wc, k_bc, k_wf, k_bf = jax.random.split(key, 5)

    x = jax.random.normal(k_x, (N, C_in, H, W), dtype=jnp.float32)

    # Deterministic parameter init (PyTorch-style uniform fan-in bounds).
    fan_conv = C_in * KH * KW
    w_conv = jax.random.uniform(k_wc, (C_out, C_in, KH, KW), jnp.float32,
                                -1.0 / np.sqrt(fan_conv), 1.0 / np.sqrt(fan_conv))
    b_conv = jax.random.uniform(k_bc, (C_out,), jnp.float32,
                                -1.0 / np.sqrt(fan_conv), 1.0 / np.sqrt(fan_conv))
    gamma = jnp.ones((C_out,), jnp.float32)   # BatchNorm2d default weight
    beta = jnp.zeros((C_out,), jnp.float32)   # BatchNorm2d default bias
    w_fc = jax.random.uniform(k_wf, (conv_flat, num_outputs), jnp.float32,
                              -1.0 / np.sqrt(conv_flat), 1.0 / np.sqrt(conv_flat))
    b_fc = jax.random.uniform(k_bf, (num_outputs,), jnp.float32,
                              -1.0 / np.sqrt(conv_flat), 1.0 / np.sqrt(conv_flat))

    params = (w_conv, b_conv, gamma, beta, w_fc, b_fc)

    out = dqn_forward(x, params, num_outputs)
    out = jax.block_until_ready(out)

    ref = jax.block_until_ready(reference_forward(x, params))
    np.testing.assert_allclose(np.asarray(out), np.asarray(ref), rtol=1e-4, atol=1e-4)

    assert out.shape == (N, num_outputs)
    print("KERNEL_OK")
</pallas_src>

<mosaic_0001>
module attributes {stable_mosaic.version = 11 : i64} {
  func.func @fused_dqn_kernel(%arg0: i32, %arg1: memref<2x36x196xf32, #tpu.memory_space<vmem>>, %arg2: memref<8x36xf32, #tpu.memory_space<vmem>>, %arg3: memref<2x8x1xf32, #tpu.memory_space<vmem>>, %arg4: memref<4x8x196xf32, #tpu.memory_space<vmem>>, %arg5: memref<1x4xf32, #tpu.memory_space<vmem>>, %arg6: memref<2x4xf32, #tpu.memory_space<vmem>>) attributes {dimension_semantics = [#tpu.dimension_semantics<arbitrary>], iteration_bounds = array<i64: 1>, scalar_prefetch = 0 : i64, scratch_operands = 0 : i64, tpu.core_type = #tpu.core_type<tc>, window_params = [{pipeline_mode = #tpu.pipeline_mode<synchronous>, transform_indices = @transform_0, window_bounds = array<i64: 2, 36, 196>}, {pipeline_mode = #tpu.pipeline_mode<synchronous>, transform_indices = @transform_1, window_bounds = array<i64: 8, 36>}, {pipeline_mode = #tpu.pipeline_mode<synchronous>, transform_indices = @transform_2, window_bounds = array<i64: 2, 8, 1>}, {pipeline_mode = #tpu.pipeline_mode<synchronous>, transform_indices = @transform_3, window_bounds = array<i64: 4, 8, 196>}, {pipeline_mode = #tpu.pipeline_mode<synchronous>, transform_indices = @transform_4, window_bounds = array<i64: 1, 4>}, {pipeline_mode = #tpu.pipeline_mode<synchronous>, transform_indices = @transform_5, window_bounds = array<i64: 2, 4>}]} {
    %c0 = arith.constant 0 : index
    %c0_0 = arith.constant 0 : index
    %0 = vector.load %arg2[%c0, %c0_0] : memref<8x36xf32, #tpu.memory_space<vmem>>, vector<8x36xf32>
    %1 = vector.shape_cast %0 : vector<8x36xf32> to vector<1x8x36xf32>
    %2 = vector.shape_cast %1 : vector<1x8x36xf32> to vector<1x8x36xf32>
    %3 = vector.broadcast %2 : vector<1x8x36xf32> to vector<2x8x36xf32>
    %c0_1 = arith.constant 0 : index
    %c0_2 = arith.constant 0 : index
    %c0_3 = arith.constant 0 : index
    %4 = vector.load %arg1[%c0_1, %c0_2, %c0_3] : memref<2x36x196xf32, #tpu.memory_space<vmem>>, vector<2x36x196xf32>
    %cst = arith.constant dense<0.000000e+00> : vector<2x8x196xf32>
    %5 = tpu.matmul %3, %4, %cst {dimension_numbers = #tpu.dot_dimension_numbers<[2], [1], [1], [2], [0, 0, 0, 1, 1, 2], [0], [0]>} : vector<2x8x36xf32>, vector<2x36x196xf32>, vector<2x8x196xf32> -> vector<2x8x196xf32>
    %cst_4 = arith.constant dense<0.000000e+00> : vector<2x8xf32>
    %6 = vector.multi_reduction <add>, %5, %cst_4 [2] : vector<2x8x196xf32> to vector<2x8xf32>
    %7 = vector.shape_cast %6 : vector<2x8xf32> to vector<2x8x1xf32>
    %cst_5 = arith.constant dense<0.000000e+00> : vector<8x1xf32>
    %8 = vector.multi_reduction <add>, %7, %cst_5 [0] : vector<2x8x1xf32> to vector<8x1xf32>
    %9 = vector.shape_cast %8 : vector<8x1xf32> to vector<1x8x1xf32>
    %cst_6 = arith.constant 0.00255102036 : f32
    %10 = vector.broadcast %cst_6 : f32 to vector<1x8x1xf32>
    %11 = arith.mulf %9, %10 : vector<1x8x1xf32>
    %12 = vector.broadcast %11 : vector<1x8x1xf32> to vector<2x8x196xf32>
    %13 = arith.subf %5, %12 : vector<2x8x196xf32>
    %14 = arith.mulf %13, %13 : vector<2x8x196xf32>
    %cst_7 = arith.constant dense<0.000000e+00> : vector<2x8xf32>
    %15 = vector.multi_reduction <add>, %14, %cst_7 [2] : vector<2x8x196xf32> to vector<2x8xf32>
    %16 = vector.shape_cast %15 : vector<2x8xf32> to vector<2x8x1xf32>
    %cst_8 = arith.constant dense<0.000000e+00> : vector<8x1xf32>
    %17 = vector.multi_reduction <add>, %16, %cst_8 [0] : vector<2x8x1xf32> to vector<8x1xf32>
    %18 = vector.shape_cast %17 : vector<8x1xf32> to vector<1x8x1xf32>
    %cst_9 = arith.constant 0.00255102036 : f32
    %19 = vector.broadcast %cst_9 : f32 to vector<1x8x1xf32>
    %20 = arith.mulf %18, %19 : vector<1x8x1xf32>
    %c0_10 = arith.constant 0 : index
    %c0_11 = arith.constant 0 : index
    %c0_12 = arith.constant 0 : index
    %21 = vector.load %arg3[%c0_10, %c0_11, %c0_12] : memref<2x8x1xf32, #tpu.memory_space<vmem>>, vector<1x8x1xf32>
    %22 = vector.shape_cast %21 : vector<1x8x1xf32> to vector<8x1xf32>
    %c1 = arith.constant 1 : index
    %c0_13 = arith.constant 0 : index
    %c0_14 = arith.constant 0 : index
    %23 = vector.load %arg3[%c1, %c0_13, %c0_14] : memref<2x8x1xf32, #tpu.memory_space<vmem>>, vector<1x8x1xf32>
    %24 = vector.shape_cast %23 : vector<1x8x1xf32> to vector<8x1xf32>
    %25 = vector.shape_cast %20 : vector<1x8x1xf32> to vector<8x1xf32>
    %cst_15 = arith.constant 9.99999974E-6 : f32
    %26 = vector.broadcast %cst_15 : f32 to vector<8x1xf32>
    %27 = arith.addf %25, %26 : vector<8x1xf32>
    %28 = math.rsqrt %27 : vector<8x1xf32>
    %29 = arith.mulf %22, %28 : vector<8x1xf32>
    %30 = vector.shape_cast %11 : vector<1x8x1xf32> to vector<8x1xf32>
    %31 = arith.mulf %30, %29 : vector<8x1xf32>
    %32 = arith.subf %24, %31 : vector<8x1xf32>
    %33 = vector.shape_cast %29 : vector<8x1xf32> to vector<1x8x1xf32>
    %34 = vector.broadcast %33 : vector<1x8x1xf32> to vector<2x8x196xf32>
    %35 = arith.mulf %5, %34 : vector<2x8x196xf32>
    %36 = vector.shape_cast %32 : vector<8x1xf32> to vector<1x8x1xf32>
    %37 = vector.broadcast %36 : vector<1x8x1xf32> to vector<2x8x196xf32>
    %38 = arith.addf %35, %37 : vector<2x8x196xf32>
    %cst_16 = arith.constant 0.000000e+00 : f32
    %39 = vector.broadcast %cst_16 : f32 to vector<2x8x196xf32>
    %40 = arith.maximumf %38, %39 : vector<2x8x196xf32>
    %41 = vector.shape_cast %40 : vector<2x8x196xf32> to vector<2x1x8x196xf32>
    %c0_17 = arith.constant 0 : index
    %c0_18 = arith.constant 0 : index
    %c0_19 = arith.constant 0 : index
    %42 = vector.load %arg4[%c0_17, %c0_18, %c0_19] : memref<4x8x196xf32, #tpu.memory_space<vmem>>, vector<4x8x196xf32>
    %43 = vector.shape_cast %42 : vector<4x8x196xf32> to vector<1x4x8x196xf32>
    %44 = vector.broadcast %41 : vector<2x1x8x196xf32> to vector<2x4x8x196xf32>
    %45 = vector.broadcast %43 : vector<1x4x8x196xf32> to vector<2x4x8x196xf32>
    %46 = arith.mulf %44, %45 : vector<2x4x8x196xf32>
    %cst_20 = arith.constant dense<0.000000e+00> : vector<2x4x8xf32>
    %47 = vector.multi_reduction <add>, %46, %cst_20 [3] : vector<2x4x8x196xf32> to vector<2x4x8xf32>
    %cst_21 = arith.constant dense<0.000000e+00> : vector<2x4xf32>
    %48 = vector.multi_reduction <add>, %47, %cst_21 [2] : vector<2x4x8xf32> to vector<2x4xf32>
    %c0_22 = arith.constant 0 : index
    %c0_23 = arith.constant 0 : index
    %49 = vector.load %arg5[%c0_22, %c0_23] : memref<1x4xf32, #tpu.memory_space<vmem>>, vector<1x4xf32>
    %50 = vector.broadcast %49 : vector<1x4xf32> to vector<2x4xf32>
    %51 = arith.addf %48, %50 : vector<2x4xf32>
    %c0_24 = arith.constant 0 : index
    %c0_25 = arith.constant 0 : index
    %52 = vector.load %arg6[%c0_24, %c0_25] : memref<2x4xf32, #tpu.memory_space<vmem>>, vector<2x4xf32>
    tpu.vector_store %arg6[%c0_24, %c0_25], %51 {strides = array<i32>} : memref<2x4xf32, #tpu.memory_space<vmem>>, vector<2x4xf32>,
    return
  }
  func.func @transform_0(%arg0: i32) -> (i32, i32, i32) {
    %c0_i32 = arith.constant 0 : i32
    %c0_i32_0 = arith.constant 0 : i32
    %c0_i32_1 = arith.constant 0 : i32
    %c0_i32_2 = arith.constant 0 : i32
    return %c0_i32, %c0_i32_0, %c0_i32_1 : i32, i32, i32
  }
  func.func @transform_1(%arg0: i32) -> (i32, i32) {
    %c0_i32 = arith.constant 0 : i32
    %c0_i32_0 = arith.constant 0 : i32
    %c0_i32_1 = arith.constant 0 : i32
    return %c0_i32, %c0_i32_0 : i32, i32
  }
  func.func @transform_2(%arg0: i32) -> (i32, i32, i32) {
    %c0_i32 = arith.constant 0 : i32
    %c0_i32_0 = arith.constant 0 : i32
    %c0_i32_1 = arith.constant 0 : i32
    %c0_i32_2 = arith.constant 0 : i32
    return %c0_i32, %c0_i32_0, %c0_i32_1 : i32, i32, i32
  }
  func.func @transform_3(%arg0: i32) -> (i32, i32, i32) {
    %c0_i32 = arith.constant 0 : i32
    %c0_i32_0 = arith.constant 0 : i32
    %c0_i32_1 = arith.constant 0 : i32
    %c0_i32_2 = arith.constant 0 : i32
    return %c0_i32, %c0_i32_0, %c0_i32_1 : i32, i32, i32
  }
  func.func @transform_4(%arg0: i32) -> (i32, i32) {
    %c0_i32 = arith.constant 0 : i32
    %c0_i32_0 = arith.constant 0 : i32
    %c0_i32_1 = arith.constant 0 : i32
    return %c0_i32, %c0_i32_0 : i32, i32
  }
  func.func @transform_5(%arg0: i32) -> (i32, i32) {
    %c0_i32 = arith.constant 0 : i32
    %c0_i32_0 = arith.constant 0 : i32
    %c0_i32_1 = arith.constant 0 : i32
    return %c0_i32, %c0_i32_0 : i32, i32
  }
}

</mosaic_0001>

<llo_original>
// kernel: dqn_forward.1
$region0: #{dqn_forward.1}
  #allocation0 [shape = 'u32[]', space=smem, size = 0x4, offset = 0x4, fixed_abs, tag = 'smem constant byte address 0x4 - core index']
  #allocation1 [shape = 'u32[144,128]{1,0:T(1,128)}', space=vmem, size = 0x12000, scoped, tag = 'internal scratch']
  %s0 = inlined_call_operand.vmem [shape: f32[2,36,196], index: 0, kind: input, shape index: {}]
  %s1 = inlined_call_operand.vmem [shape: f32[8,36], index: 1, kind: input, shape index: {}]
  %s2 = inlined_call_operand.vmem [shape: f32[2,8,1], index: 2, kind: input, shape index: {}]
  %s3 = inlined_call_operand.vmem [shape: f32[4,8,196], index: 3, kind: input, shape index: {}]
  %s4 = inlined_call_operand.vmem [shape: f32[1,4], index: 4, kind: input, shape index: {}]
  %s5 = inlined_call_operand.hbm [shape: f32[2,4], index: 5, kind: output, shape index: {}]
  %s6 = sld [smem:[#allocation0]]
  $region30: #{dqn_forward.1} parent=0
    _
  %s8 = ssub.s32 1, %s6
  %s9 = scalar_select 0, %s8, %s6
  $region1: #{dqn_forward.1} parent=0
    #allocation2 [shape = 'u8[1024]{0}', space=vmem, size = 0x400, scoped, tag = 'output window, operand 0, single buffered']
    #allocation3 [shape = 's32[1]{0}', space=sflag, size = 0x4, scoped, tag = 'scoped memory for dqn_forward.1']
    %10 = vsyncpa [#allocation3], 0
    // Predicated region
    $region2: #{dqn_forward.1} parent=1 // pred_check
      _
    $region3: #{dqn_forward.1} parent=1 // pred_check_branch
      %12 = sbr.rel (0) target = $region5
    $region4: #{dqn_forward.1} parent=1 // pred_region
      _
    $region5: #{dqn_forward.1} parent=1 // pred_fallthru
      _
    // Predicated region
    $region6: #{dqn_forward.1} parent=1 // pred_check
      _
    $region7: #{dqn_forward.1} parent=1 // pred_check_branch
      %14 = sbr.rel (0) target = $region9
    $region8: #{dqn_forward.1} parent=1 // pred_region
      _
    $region9: #{dqn_forward.1} parent=1 // pred_fallthru
      _
    // Predicated region
    $region10: #{dqn_forward.1} parent=1 // pred_check
      _
    $region11: #{dqn_forward.1} parent=1 // pred_check_branch
      %16 = sbr.rel (0) target = $region13
    $region12: #{dqn_forward.1} parent=1 // pred_region
      _
    $region13: #{dqn_forward.1} parent=1 // pred_fallthru
      _
    // Predicated region
    $region14: #{dqn_forward.1} parent=1 // pred_check
      _
    $region15: #{dqn_forward.1} parent=1 // pred_check_branch
      %18 = sbr.rel (0) target = $region17
    $region16: #{dqn_forward.1} parent=1 // pred_region
      _
    $region17: #{dqn_forward.1} parent=1 // pred_fallthru
      _
    // Predicated region
    $region18: #{dqn_forward.1} parent=1 // pred_check
      _
    $region19: #{dqn_forward.1} parent=1 // pred_check_branch
      %20 = sbr.rel (0) target = $region21
    $region20: #{dqn_forward.1} parent=1 // pred_region
      _
    $region21: #{dqn_forward.1} parent=1 // pred_fallthru
      _
    %v21 = vld [vmem:[%s1] sm:$0xff]
    %v22 = vld [vmem:[%s0] sm:$0xff]
    %v23 = vld [vmem:[%s0 + $0x8] sm:$0xff]
    %v24 = vld [vmem:[%s0 + $0x10] sm:$0xff]
    %v25 = vld [vmem:[%s0 + $0x18] sm:$0xff]
    %v26 = vld [vmem:[%s0 + $0x20] sm:$0xff]
    %v27 = vld [vmem:[%s0 + $0x28] sm:$0xff]
    %v28 = vld [vmem:[%s0 + $0x30] sm:$0xff]
    %v29 = vld [vmem:[%s0 + $0x38] sm:$0xff]
    %v30 = vld [vmem:[%s0 + $0x40] sm:$0xf]
    %v31 = vld [vmem:[%s0 + $0x48] sm:$0xf]
    %v32 = vld [vmem:[%s0 + $0x50] sm:$0xff]
    %v33 = vld [vmem:[%s0 + $0x58] sm:$0xff]
    %v34 = vld [vmem:[%s0 + $0x60] sm:$0xff]
    %v35 = vld [vmem:[%s0 + $0x68] sm:$0xff]
    %v36 = vld [vmem:[%s0 + $0x70] sm:$0xff]
    %v37 = vld [vmem:[%s0 + $0x78] sm:$0xff]
    %v38 = vld [vmem:[%s0 + $0x80] sm:$0xff]
    %v39 = vld [vmem:[%s0 + $0x88] sm:$0xff]
    %v40 = vld [vmem:[%s0 + $0x90] sm:$0xf]
    %v41 = vld [vmem:[%s0 + $0x98] sm:$0xf]
    %vm42 = vcmask 293888
    %v44 = vsel %vm42, %v21, 0
    %vm46 = vcmask 1043456
    %v48 = vsel %vm46, %v30, 0
    %v51 = vsel %vm46, %v31, 0
    %53 = vmatprep.subr.mxu0 0.0
    %54 = vmatpush1.msra.mxu0 0.0
    %55 = vmatprep.subr.mxu0 0.0
    %56 = vmatpush1.msra.mxu0 0.0
    %57 = vmatprep.subr.mxu0 0.0
    %58 = vmatpush1.msra.mxu0 0.0
    %59 = vmatprep.subr.mxu0 0.0
    %60 = vmatpush1.msra.mxu0 0.0
    %61 = vmatprep.subr.mxu0 0.0
    %62 = vmatpush1.msra.mxu0 0.0
    %63 = vmatprep.subr.mxu0 0.0
    %64 = vmatpush1.msra.mxu0 0.0
    %65 = vmatprep.subr.mxu0 0.0
    %66 = vmatpush1.msra.mxu0 0.0
    %67 = vmatprep.subr.mxu0 0.0
    %68 = vmatpush1.msra.mxu0 0.0
    %69 = vmatprep.subr.mxu0 0.0
    %70 = vmatpush1.msra.mxu0 0.0
    %71 = vmatprep.subr.mxu0 0.0
    %72 = vmatpush1.msra.mxu0 0.0
    %73 = vmatprep.subr.mxu0 0.0
    %74 = vmatpush1.msra.mxu0 0.0
    %75 = vmatprep.subr.mxu0 %v51
    %76 = vmatpush1.msra.mxu0 %v48
    %77 = vmatprep.subr.mxu0 %v29
    %78 = vmatpush1.msra.mxu0 %v28
    %79 = vmatprep.subr.mxu0 %v27
    %80 = vmatpush1.msra.mxu0 %v26
    %81 = vmatprep.subr.mxu0 %v25
    %82 = vmatpush1.msra.mxu0 %v24
    %83 = vmatprep.subr.mxu0 %v23
    %84 = vmatpush1.msra.mxu0 %v22
    %85 = vmatprep.subr.mxu0 0.0
    %86 = vmatpush2.msra.mxu0 0.0
    %87 = vmatprep.subr.mxu0 0.0
    %88 = vmatpush2.msra.mxu0 0.0
    %89 = vmatprep.subr.mxu0 0.0
    %90 = vmatpush2.msra.mxu0 0.0
    %91 = vmatprep.subr.mxu0 0.0
    %92 = vmatpush2.msra.mxu0 0.0
    %93 = vmatprep.subr.mxu0 0.0
    %94 = vmatpush2.msra.mxu0 0.0
    %95 = vmatprep.subr.mxu0 0.0
    %96 = vmatpush2.msra.mxu0 0.0
    %97 = vmatprep.subr.mxu0 0.0
    %98 = vmatpush2.msra.mxu0 0.0
    %99 = vmatprep.subr.mxu0 0.0
    %100 = vmatpush2.msra.mxu0 0.0
    %101 = vmatprep.subr.mxu0 0.0
    %102 = vmatpush2.msra.mxu0 0.0
    %103 = vmatprep.subr.mxu0 0.0
    %104 = vmatpush2.msra.mxu0 0.0
    %105 = vmatprep.subr.mxu0 0.0
    %106 = vmatpush2.msra.mxu0 0.0
    %107 = vmatprep.subr.mxu0 0.0
    %108 = vmatpush2.msra.mxu0 0.0
    %109 = vmatprep.subr.mxu0 0.0
    %110 = vmatpush2.msra.mxu0 0.0
    %111 = vmatprep.subr.mxu0 0.0
    %112 = vmatpush2.msra.mxu0 0.0
    %113 = vmatprep.subr.mxu0 0.0
    %114 = vmatpush2.msra.mxu0 0.0
    %115 = vmatprep.subr.mxu0 0.0
    %116 = vmatpush2.msra.mxu0 0.0
    %117 = vmatprep.mubr.f32.mxu0 0.0
    %118 = vmatmul.mubr.f32.gmra.mxu0 %v44
    %v119 = vpop.f32.mrf.mxu0
    %v120 = vadd.f32 0.0, %v119
    %v121 = vpop.f32.mrf.mxu0
    %v122 = vadd.f32 0.0, %v121
    %123 = vdwg.mxu0
    %v125 = vsel %vm46, %v40, 0
    %v128 = vsel %vm46, %v41, 0
    %130 = vmatprep.subr.mxu0 0.0
    %131 = vmatpush1.msra.mxu0 0.0
    %132 = vmatprep.subr.mxu0 0.0
    %133 = vmatpush1.msra.mxu0 0.0
    %134 = vmatprep.subr.mxu0 0.0
    %135 = vmatpush1.msra.mxu0 0.0
    %136 = vmatprep.subr.mxu0 0.0
    %137 = vmatpush1.msra.mxu0 0.0
    %138 = vmatprep.subr.mxu0 0.0
    %139 = vmatpush1.msra.mxu0 0.0
    %140 = vmatprep.subr.mxu0 0.0
    %141 = vmatpush1.msra.mxu0 0.0
    %142 = vmatprep.subr.mxu0 0.0
    %143 = vmatpush1.msra.mxu0 0.0
    %144 = vmatprep.subr.mxu0 0.0
    %145 = vmatpush1.msra.mxu0 0.0
    %146 = vmatprep.subr.mxu0 0.0
    %147 = vmatpush1.msra.mxu0 0.0
    %148 = vmatprep.subr.mxu0 0.0
    %149 = vmatpush1.msra.mxu0 0.0
    %150 = vmatprep.subr.mxu0 0.0
    %151 = vmatpush1.msra.mxu0 0.0
    %152 = vmatprep.subr.mxu0 %v128
    %153 = vmatpush1.msra.mxu0 %v125
    %154 = vmatprep.subr.mxu0 %v39
    %155 = vmatpush1.msra.mxu0 %v38
    %156 = vmatprep.subr.mxu0 %v37
    %157 = vmatpush1.msra.mxu0 %v36
    %158 = vmatprep.subr.mxu0 %v35
    %159 = vmatpush1.msra.mxu0 %v34
    %160 = vmatprep.subr.mxu0 %v33
    %161 = vmatpush1.msra.mxu0 %v32
    %162 = vmatprep.subr.mxu0 0.0
    %163 = vmatpush2.msra.mxu0 0.0
    %164 = vmatprep.subr.mxu0 0.0
    %165 = vmatpush2.msra.mxu0 0.0
    %166 = vmatprep.subr.mxu0 0.0
    %167 = vmatpush2.msra.mxu0 0.0
    %168 = vmatprep.subr.mxu0 0.0
    %169 = vmatpush2.msra.mxu0 0.0
    %170 = vmatprep.subr.mxu0 0.0
    %171 = vmatpush2.msra.mxu0 0.0
    %172 = vmatprep.subr.mxu0 0.0
    %173 = vmatpush2.msra.mxu0 0.0
    %174 = vmatprep.subr.mxu0 0.0
    %175 = vmatpush2.msra.mxu0 0.0
    %176 = vmatprep.subr.mxu0 0.0
    %177 = vmatpush2.msra.mxu0 0.0
    %178 = vmatprep.subr.mxu0 0.0
    %179 = vmatpush2.msra.mxu0 0.0
    %180 = vmatprep.subr.mxu0 0.0
    %181 = vmatpush2.msra.mxu0 0.0
    %182 = vmatprep.subr.mxu0 0.0
    %183 = vmatpush2.msra.mxu0 0.0
    %184 = vmatprep.subr.mxu0 0.0
    %185 = vmatpush2.msra.mxu0 0.0
    %186 = vmatprep.subr.mxu0 0.0
    %187 = vmatpush2.msra.mxu0 0.0
    %188 = vmatprep.subr.mxu0 0.0
    %189 = vmatpush2.msra.mxu0 0.0
    %190 = vmatprep.subr.mxu0 0.0
    %191 = vmatpush2.msra.mxu0 0.0
    %192 = vmatprep.subr.mxu0 0.0
    %193 = vmatpush2.msra.mxu0 0.0
    %194 = vmatprep.mubr.f32.mxu0 0.0
    %195 = vmatmul.mubr.f32.gmra.mxu0 %v44
    %v196 = vpop.f32.mrf.mxu0
    %v197 = vadd.f32 0.0, %v196
    %v198 = vpop.f32.mrf.mxu0
    %v199 = vadd.f32 0.0, %v198
    %200 = vdwg.mxu0
    %vm201 = vcmask 556032
    %v202 = vsel %vm201, %v122, 0.0
    %v203 = vadd.f32 %v120, %v202
    %204 = vadd.xlane.f32.xlu0 %v203
    %v205 = vpop.xlane.xlu0 %204
    %v206 = vsel %vm201, %v199, 0.0
    %v207 = vadd.f32 %v197, %v206
    %208 = vadd.xlane.f32.xlu0 %v207
    %v209 = vpop.xlane.xlu0 %208
    %v210 = vadd.f32 %v205, %v209
    %v211 = vmul.f32 %v210, 0.0025510204
    %v212 = vsub.f32 %v120, %v211
    %v213 = vsub.f32 %v122, %v211
    %v214 = vsub.f32 %v197, %v211
    %v215 = vsub.f32 %v199, %v211
    %v216 = vmul.f32 %v212, %v212
    %v217 = vmul.f32 %v213, %v213
    %v218 = vmul.f32 %v214, %v214
    %v219 = vmul.f32 %v215, %v215
    %v220 = vsel %vm201, %v217, 0.0
    %v221 = vadd.f32 %v216, %v220
    %222 = vadd.xlane.f32.xlu0 %v221
    %v223 = vpop.xlane.xlu0 %222
    %v224 = vsel %vm201, %v219, 0.0
    %v225 = vadd.f32 %v218, %v224
    %226 = vadd.xlane.f32.xlu0 %v225
    %v227 = vpop.xlane.xlu0 %226
    %v228 = vadd.f32 %v223, %v227
    %v229 = vmul.f32 %v228, 0.0025510204
    %v230 = vld [vmem:[%s2] sm:$0xff]
    %s231 = scalar_lea.vmem %s2, 8
    %v232 = vld [vmem:[%s231] sm:$0xff]
    %v233 = vadd.f32 %v229, 1e-05
    %v234 = vrsqrt.pop %v233
    %v235 = vmul.f32 %v230, %v234
    %v236 = vmul.f32 %v211, %v235
    %v237 = vsub.f32 %v232, %v236
    %239 = vset.pattern.permute.xlu0 0
    %240 = vperm.xlu0 %239, %v235
    %v241 = vpop.permute.xlu0 %240
    %v243 = vmul.f32 %v120, %v241
    %v244 = vmul.f32 %v122, %v241
    %v245 = vmul.f32 %v197, %v241
    %v246 = vmul.f32 %v199, %v241
    %248 = vset.pattern.permute.xlu0 0
    %249 = vperm.xlu0 %248, %v237
    %v250 = vpop.permute.xlu0 %249
    %v252 = vadd.f32 %v243, %v250
    %v253 = vadd.f32 %v244, %v250
    %v254 = vadd.f32 %v245, %v250
    %v255 = vadd.f32 %v246, %v250
    %v256 = vmax.f32 %v252, 0.0
    %v257 = vmax.f32 %v253, 0.0
    %v258 = vmax.f32 %v254, 0.0
    %v259 = vmax.f32 %v255, 0.0
    %v260 = vld [vmem:[%s3] sm:$0xff]
    %v261 = vld [vmem:[%s3 + $0x8] sm:$0xff]
    %v262 = vld [vmem:[%s3 + $0x10] sm:$0xff]
    %v263 = vld [vmem:[%s3 + $0x18] sm:$0xff]
    %v264 = vld [vmem:[%s3 + $0x20] sm:$0xff]
    %v265 = vld [vmem:[%s3 + $0x28] sm:$0xff]
    %v266 = vld [vmem:[%s3 + $0x30] sm:$0xff]
    %v267 = vld [vmem:[%s3 + $0x38] sm:$0xff]
    %v268 = vmul.f32 %v256, %v260
    %v269 = vmul.f32 %v257, %v261
    %v270 = vmul.f32 %v256, %v262
    %v271 = vmul.f32 %v257, %v263
    %v272 = vmul.f32 %v256, %v264
    %v273 = vmul.f32 %v257, %v265
    %v274 = vmul.f32 %v256, %v266
    %v275 = vmul.f32 %v257, %v267
    %v276 = vmul.f32 %v258, %v260
    %v277 = vmul.f32 %v259, %v261
    %v278 = vmul.f32 %v258, %v262
    %v279 = vmul.f32 %v259, %v263
    %v280 = vmul.f32 %v258, %v264
    %v281 = vmul.f32 %v259, %v265
    %v282 = vmul.f32 %v258, %v266
    %v283 = vmul.f32 %v259, %v267
    %v284 = vsel %vm201, %v269, 0.0
    %v285 = vadd.f32 %v268, %v284
    %286 = vadd.xlane.f32.xlu0 %v285
    %v287 = vpop.xlane.xlu0 %286
    %v288 = vsel %vm201, %v271, 0.0
    %v289 = vadd.f32 %v270, %v288
    %290 = vadd.xlane.f32.xlu0 %v289
    %v291 = vpop.xlane.xlu0 %290
    %v292 = vsel %vm201, %v273, 0.0
    %v293 = vadd.f32 %v272, %v292
    %294 = vadd.xlane.f32.xlu0 %v293
    %v295 = vpop.xlane.xlu0 %294
    %v296 = vsel %vm201, %v275, 0.0
    %v297 = vadd.f32 %v274, %v296
    %298 = vadd.xlane.f32.xlu0 %v297
    %v299 = vpop.xlane.xlu0 %298
    %v300 = vsel %vm201, %v277, 0.0
    %v301 = vadd.f32 %v276, %v300
    %302 = vadd.xlane.f32.xlu0 %v301
    %v303 = vpop.xlane.xlu0 %302
    %v304 = vsel %vm201, %v279, 0.0
    %v305 = vadd.f32 %v278, %v304
    %306 = vadd.xlane.f32.xlu0 %v305
    %v307 = vpop.xlane.xlu0 %306
    %v308 = vsel %vm201, %v281, 0.0
    %v309 = vadd.f32 %v280, %v308
    %310 = vadd.xlane.f32.xlu0 %v309
    %v311 = vpop.xlane.xlu0 %310
    %v312 = vsel %vm201, %v283, 0.0
    %v313 = vadd.f32 %v282, %v312
    %314 = vadd.xlane.f32.xlu0 %v313
    %v315 = vpop.xlane.xlu0 %314
    %v324 = vlaneseq
    %v325 = vand.u32 %v324, 127
    %v326 = vlaneseq
    %v327 = vshrl.u32 %v326, 7
    %v328 = vsub.s32 %v325, %v327
    %v329 = vrot.slane %v287, %v328
    %v330 = vlaneseq
    %v331 = vshrl.u32 %v330, 7
    %v332 = vsub.s32 %v325, %v331
    %v333 = vrot.slane %v291, %v332
    %v334 = vlaneseq
    %v335 = vshrl.u32 %v334, 7
    %v336 = vsub.s32 %v325, %v335
    %v337 = vrot.slane %v295, %v336
    %v338 = vlaneseq
    %v339 = vshrl.u32 %v338, 7
    %v340 = vsub.s32 %v325, %v339
    %v341 = vrot.slane %v299, %v340
    %v342 = vlaneseq
    %v343 = vshrl.u32 %v342, 7
    %v344 = vsub.s32 %v325, %v343
    %v345 = vrot.slane %v303, %v344
    %v346 = vlaneseq
    %v347 = vshrl.u32 %v346, 7
    %v348 = vsub.s32 %v325, %v347
    %v349 = vrot.slane %v307, %v348
    %v350 = vlaneseq
    %v351 = vshrl.u32 %v350, 7
    %v352 = vsub.s32 %v325, %v351
    %v353 = vrot.slane %v311, %v352
    %v354 = vlaneseq
    %v355 = vshrl.u32 %v354, 7
    %v356 = vsub.s32 %v325, %v355
    %v357 = vrot.slane %v315, %v356
    %vm358 = vcmask 1041409
    %v359 = vsel %vm358, %v333, %v329
    %vm360 = vcmask 1042434
    %v361 = vsel %vm360, %v337, %v359
    %vm362 = vcmask 1043459
    %v363 = vsel %vm362, %v341, %v361
    %v364 = vsel %vm358, %v349, %v345
    %v365 = vsel %vm360, %v353, %v364
    %v366 = vsel %vm362, %v357, %v365
    %vm369 = vcmask 60416
    %v370 = vsel %vm369, %v363, 0.0
    %371 = vadd.xlane.f32.xlu0 %v370
    %v372 = vpop.xlane.xlu0 %371
    %v373 = vsel %vm369, %v366, 0.0
    %374 = vadd.xlane.f32.xlu0 %v373
    %v375 = vpop.xlane.xlu0 %374
    %v376 = vld [vmem:[%s4] sm:$0x1]
    %v378 = vlaneseq
    %v379 = vshrl.u32 %v378, 7
    %v380 = vsub.s32 0, %v379
    %v381 = vrot.slane %v376, %v380
    %383 = vbcast.lane.b32.xlu0 %v381, 256
    %v384 = vpop.permute.xlu0 %383
    %v386 = vadd.f32 %v372, %v384
    %v387 = vadd.f32 %v375, %v384
    %390 = vset.pattern.permute.xlu0 0
    %391 = vperm.xlu0 %390, %v386
    %v392 = vpop.permute.xlu0 %391
    %393 = vset.pattern.permute.xlu0 0
    %394 = vperm.xlu0 %393, %v387
    %v395 = vpop.permute.xlu0 %394
    %v396 = vlaneseq
    %v397 = vshrl.u32 %v396, 7
    %v398 = vsub.s32 %v325, %v397
    %v399 = vrot.slane %v392, %v398
    %v400 = vlaneseq
    %v401 = vshrl.u32 %v400, 7
    %v402 = vsub.s32 %v325, %v401
    %v403 = vrot.slane %v395, %v402
    %v404 = vsel %vm358, %v403, %v399
    %vm406 = vcmask 25600
    %407 = vst.msk [vmem:[#allocation2] sm:$0x3] %vm406, %v404
    // Predicated region
    $region22: #{dqn_forward.1} parent=1 // pred_check
      _
    $region23: #{dqn_forward.1} parent=1 // pred_check_branch
      %409 = sbr.rel (0) target = $region25
    $region24: #{dqn_forward.1} parent=1 // pred_region
      %s411 = ssub.s32 32, 32
      %412 = vsyncadd [#allocation3], %s411
      %s414 = sshll.u32 [#allocation2], 4
      %s415 = int_to_ptr.vmem [resolvable:$true] %s414
      %417 = dma.vmem_to_hbm [thread:$0]  %s415, 32, %s5, [#allocation3]
    $region25: #{dqn_forward.1} parent=1 // pred_fallthru
      _
    // Predicated region
    $region26: #{dqn_forward.1} parent=1 // pred_check
      _
    $region27: #{dqn_forward.1} parent=1 // pred_check_branch
      %419 = sbr.rel (0) target = $region29
    $region28: #{dqn_forward.1} parent=1 // pred_region
      %420 = dma.done [#allocation3], 32
    $region29: #{dqn_forward.1} parent=1 // pred_fallthru
      _
    %421 = vsyncpa [#allocation3], 1

</llo_original>
